<compile_context>
chip_gen: v6e
topology: v6e:2x2x1
jax: 0.10.0
libtpu: 0.0.40
codegen_flags: <defaults>
</compile_context>

<pallas_src>
from functools import partial

import jax
import jax.numpy as jnp
from jax import lax
from jax.experimental import pallas as pl
from jax.experimental.pallas import tpu as pltpu


def conv_bn_relu_kernel(*refs, ks, cin, wp, b_n, chunk, norm, res):
    """Processes b_n images per grid step, flattened-spatial (lane-dense) layout.

    Ref order (inputs depend on flags):
      x_ref:    (bN, Cin, L)          bf16 padded images, rows flattened row-major
      w_ref:    (Cout, ks*ks*Cin)     bf16 weights, BN scale already folded in
      bias_ref: (Cout, 1)             f32 folded BN bias          [only if norm]
      r_ref:    (bN, Cin, Lout_pad)   full-precision residual     [only if res]
      o_ref:    (bN, Cout, Lout_pad)  output (junk right-pad columns stripped by wrapper)
      col_ref:  (ks*ks*Cin, Lout_pad) bf16 im2col scratch (VMEM)
    """
    it = iter(refs)
    x_ref = next(it)
    w_ref = next(it)
    bias_ref = next(it) if norm else None
    r_ref = next(it) if res else None
    o_ref = next(it)
    col_ref = next(it)

    lout = o_ref.shape[2]
    w = w_ref[...]                                   # (Cout, K) bf16, loaded once per step

    for b in range(b_n):
        # --- im2col: pay each tap's lane shift exactly once, into the scratch ---
        for t in range(ks * ks):
            d = (t // ks) * wp + (t % ks)
            col_ref[t * cin:(t + 1) * cin, :] = x_ref[b, :, d:d + lout]

        # --- one MXU matmul (K = ks*ks*Cin) + epilogue, chunked over lanes ---
        for c0 in range(0, lout, chunk):
            cw = min(chunk, lout - c0)               # always a multiple of 128
            acc = jnp.dot(w, col_ref[:, c0:c0 + cw],
                          preferred_element_type=jnp.float32)     # (Cout, cw) f32
            if norm:
                acc = jnp.maximum(acc + bias_ref[...], 0.0)       # bias + ReLU
            if res:
                acc = acc + r_ref[b, :, c0:c0 + cw]               # full-precision residual
            o_ref[b, :, c0:c0 + cw] = acc.astype(o_ref.dtype)     # unmasked lane-dense store


def _round_up(x, m):
    return (x + m - 1) // m * m


def conv_bn_relu(x_nchw, weight_oihw, gamma=None, beta=None,
                 running_mean=None, running_var=None,
                 *, ks, stride=1, norm=True, res=False, eps=1e-5):
    """Pallas equivalent of ConvBNReLU.forward.  x_nchw: (N, Cin, H, W) -> (N, Cout, H, W)."""
    assert stride == 1, "stride != 1 not implemented"  # TODO(synk): strided conv
    N, Cin, H, W = x_nchw.shape
    Cout = weight_oihw.shape[0]
    if res:
        assert Cin == Cout, "residual path requires in_c == out_c"

    p = ks // 2
    Hp, Wp = H + 2 * p, W + 2 * p
    Lout = H * Wp                                       # valid lane-dense output width
    Lout_pad = _round_up(Lout, 128)                     # 128-aligned -> unmasked stores
    L = _round_up((ks - 1) * (Wp + 1) + Lout_pad, 128)  # padded input lane count
    K = ks * ks * Cin

    bN = min(N, 8)                                      # images per grid step
    Npad = _round_up(N, bN)

    # ---- wrapper glue (a handful of fused XLA ops) ----
    # spatial pad + flatten + batch/lane pad + bf16 cast
    x_pad = jnp.pad(x_nchw, ((0, 0), (0, 0), (p, p), (p, p)))
    xflat = x_pad.reshape(N, Cin, Hp * Wp)
    xflat = jnp.pad(xflat, ((0, Npad - N), (0, 0), (0, L - Hp * Wp))).astype(jnp.bfloat16)

    # fold BN scale into the conv weights (in f32, one bf16 round at the end)
    w_f32 = weight_oihw.astype(jnp.float32)
    if norm:
        scale = gamma.astype(jnp.float32) / jnp.sqrt(running_var.astype(jnp.float32) + eps)
        bias = beta.astype(jnp.float32) - running_mean.astype(jnp.float32) * scale
        w_f32 = w_f32 * scale.reshape(Cout, 1, 1, 1)
    # (O,I,kh,kw) -> (O,kh,kw,I) -> (Cout, ks*ks*Cin); row t*Cin+i matches the col scratch.
    w_flat = jnp.transpose(w_f32, (0, 2, 3, 1)).reshape(Cout, K).astype(jnp.bfloat16)

    args = [xflat, w_flat]
    in_specs = [
        pl.BlockSpec((bN, Cin, L), lambda nb: (nb, 0, 0)),
        pl.BlockSpec((Cout, K), lambda nb: (0, 0)),
    ]
    if norm:
        args.append(bias.reshape(Cout, 1))
        in_specs.append(pl.BlockSpec((Cout, 1), lambda nb: (0, 0)))
    if res:
        # full-precision (un-cast) x, laid out to match the output lanes
        r_in = jnp.pad(x_nchw, ((0, Npad - N), (0, 0), (0, 0), (0, Wp - W)))
        r_in = r_in.reshape(Npad, Cin, Lout)
        r_in = jnp.pad(r_in, ((0, 0), (0, 0), (0, Lout_pad - Lout)))
        args.append(r_in)
        in_specs.append(pl.BlockSpec((bN, Cin, Lout_pad), lambda nb: (nb, 0, 0)))

    out_dtype = x_nchw.dtype
    cost = pl.CostEstimate(
        flops=int(2 * Npad * Cout * K * Lout_pad),
        transcendentals=0,
        bytes_accessed=int(xflat.size * 2 + w_flat.size * 2
                           + Npad * Cout * Lout_pad * jnp.dtype(out_dtype).itemsize),
    )

    out_wide = pl.pallas_call(
        partial(conv_bn_relu_kernel, ks=ks, cin=Cin, wp=Wp, b_n=bN,
                chunk=512, norm=norm, res=res),
        out_shape=jax.ShapeDtypeStruct((Npad, Cout, Lout_pad), out_dtype),
        grid=(Npad // bN,),
        in_specs=in_specs,
        out_specs=pl.BlockSpec((bN, Cout, Lout_pad), lambda nb: (nb, 0, 0)),
        scratch_shapes=[pltpu.VMEM((K, Lout_pad), jnp.bfloat16)],
        compiler_params=pltpu.CompilerParams(
            dimension_semantics=("parallel",),       # batch blocks -> both TCs on v7x
            vmem_limit_bytes=32 * 1024 * 1024,       # explicit, safe on v5e/v6e/v7x
        ),
        cost_estimate=cost,
    )(*args)

    # (Npad, Cout, Lout_pad) -> strip batch pad & junk columns -> NCHW. No transpose.
    return out_wide[:N, :, :Lout].reshape(N, Cout, H, Wp)[:, :, :, :W]


def _reference(x, w, gamma, beta, running_mean, running_var,
               *, ks, norm, res, eps=1e-5):
    """Pure-JAX reference (eval-mode BN), NCHW throughout."""
    p = ks // 2
    y = lax.conv_general_dilated(
        x, w, window_strides=(1, 1), padding=[(p, p), (p, p)],
        dimension_numbers=("NCHW", "OIHW", "NCHW"))
    if norm:
        scale = gamma / jnp.sqrt(running_var + eps)
        bias = beta - running_mean * scale
        y = y * scale.reshape(1, -1, 1, 1) + bias.reshape(1, -1, 1, 1)
        y = jnp.maximum(y, 0.0)
    if res:
        y = x + y
    return y


if __name__ == "__main__":
    key = jax.random.PRNGKey(0)

    # ---- case 1: norm=True, res=False, in_c=4 -> out_c=8, ks=3 ----
    N, Cin, H, W, Cout, ks = 2, 4, 16, 16, 8, 3
    k1, k2, k3, k4, k5, k6 = jax.random.split(key, 6)
    x = jax.random.normal(k1, (N, Cin, H, W), jnp.float32)
    w = jax.random.normal(k2, (Cout, Cin, ks, ks), jnp.float32) * 0.1
    gamma = jax.random.normal(k3, (Cout,), jnp.float32) * 0.1 + 1.0
    beta = jax.random.normal(k4, (Cout,), jnp.float32) * 0.1
    rmean = jax.random.normal(k5, (Cout,), jnp.float32) * 0.1
    rvar = jax.random.uniform(k6, (Cout,), jnp.float32, minval=0.5, maxval=1.5)

    out1 = conv_bn_relu(x, w, gamma, beta, rmean, rvar, ks=ks, norm=True, res=False)
    jax.block_until_ready(out1)
    ref1 = _reference(x, w, gamma, beta, rmean, rvar, ks=ks, norm=True, res=False)
    assert out1.shape == (N, Cout, H, W)
    # bf16 matmul operands (BN scale folded in f32, one bf16 round) -> loosened tolerance.
    err1 = float(jnp.max(jnp.abs(out1 - ref1)))
    assert jnp.allclose(out1, ref1, atol=2e-2, rtol=2e-2), f"case1 max err {err1}"

    # ---- case 2: norm=True, res=True (in_c == out_c == 4), ks=3 ----
    Cres = 4
    k7, k8 = jax.random.split(k6, 2)
    xr = jax.random.normal(k7, (N, Cres, H, W), jnp.float32)
    wr = jax.random.normal(k8, (Cres, Cres, ks, ks), jnp.float32) * 0.1
    g2 = jnp.ones((Cres,), jnp.float32)
    b2 = jnp.zeros((Cres,), jnp.float32)
    rm2 = jnp.zeros((Cres,), jnp.float32)
    rv2 = jnp.ones((Cres,), jnp.float32)

    out2 = conv_bn_relu(xr, wr, g2, b2, rm2, rv2, ks=ks, norm=True, res=True)
    jax.block_until_ready(out2)
    ref2 = _reference(xr, wr, g2, b2, rm2, rv2, ks=ks, norm=True, res=True)
    err2 = float(jnp.max(jnp.abs(out2 - ref2)))
    assert jnp.allclose(out2, ref2, atol=2e-2, rtol=2e-2), f"case2 max err {err2}"

    # ---- case 3: norm=False, res=False (plain conv, no bias input), ks=3 ----
    out3 = conv_bn_relu(xr, wr, ks=ks, norm=False, res=False)
    jax.block_until_ready(out3)
    ref3 = _reference(xr, wr, None, None, None, None, ks=ks, norm=False, res=False)
    err3 = float(jnp.max(jnp.abs(out3 - ref3)))
    assert jnp.allclose(out3, ref3, atol=2e-2, rtol=2e-2), f"case3 max err {err3}"

    print("KERNEL_OK")
</pallas_src>

<mosaic_0001>
module attributes {stable_mosaic.version = 11 : i64} {
  func.func @conv_bn_relu_kernel(%arg0: i32, %arg1: memref<2x4x512xbf16, #tpu.memory_space<vmem>>, %arg2: memref<8x36xbf16, #tpu.memory_space<vmem>>, %arg3: memref<8x1xf32, #tpu.memory_space<vmem>>, %arg4: memref<2x8x384xf32, #tpu.memory_space<vmem>>, %arg5: memref<36x384xbf16, #tpu.memory_space<vmem>>) attributes {dimension_semantics = [#tpu.dimension_semantics<parallel>], iteration_bounds = array<i64: 1>, scalar_prefetch = 0 : i64, scratch_operands = 1 : i64, tpu.core_type = #tpu.core_type<tc>, window_params = [{transform_indices = @transform_0, window_bounds = array<i64: 2, 4, 512>}, {pipeline_mode = #tpu.pipeline_mode<synchronous>, transform_indices = @transform_1, window_bounds = array<i64: 8, 36>}, {pipeline_mode = #tpu.pipeline_mode<synchronous>, transform_indices = @transform_2, window_bounds = array<i64: 8, 1>}, {transform_indices = @transform_3, window_bounds = array<i64: 2, 8, 384>}]} {
    %c0 = arith.constant 0 : index
    %c0_0 = arith.constant 0 : index
    %0 = vector.load %arg2[%c0, %c0_0] : memref<8x36xbf16, #tpu.memory_space<vmem>>, vector<8x36xbf16>
    %c0_1 = arith.constant 0 : index
    %c0_2 = arith.constant 0 : index
    %c0_3 = arith.constant 0 : index
    %1 = vector.load %arg1[%c0_1, %c0_2, %c0_3] : memref<2x4x512xbf16, #tpu.memory_space<vmem>>, vector<1x4x384xbf16>
    %2 = vector.shape_cast %1 : vector<1x4x384xbf16> to vector<4x384xbf16>
    %c0_4 = arith.constant 0 : index
    %c0_5 = arith.constant 0 : index
    %3 = vector.load %arg5[%c0_4, %c0_5] : memref<36x384xbf16, #tpu.memory_space<vmem>>, vector<4x384xbf16>
    tpu.vector_store %arg5[%c0_4, %c0_5], %2 {strides = array<i32>} : memref<36x384xbf16, #tpu.memory_space<vmem>>, vector<4x384xbf16>,
    %c0_6 = arith.constant 0 : index
    %c0_7 = arith.constant 0 : index
    %c1 = arith.constant 1 : index
    %4 = vector.load %arg1[%c0_6, %c0_7, %c1] : memref<2x4x512xbf16, #tpu.memory_space<vmem>>, vector<1x4x384xbf16>
    %5 = vector.shape_cast %4 : vector<1x4x384xbf16> to vector<4x384xbf16>
    %c4 = arith.constant 4 : index
    %c0_8 = arith.constant 0 : index
    %6 = vector.load %arg5[%c4, %c0_8] : memref<36x384xbf16, #tpu.memory_space<vmem>>, vector<4x384xbf16>
    tpu.vector_store %arg5[%c4, %c0_8], %5 {strides = array<i32>} : memref<36x384xbf16, #tpu.memory_space<vmem>>, vector<4x384xbf16>,
    %c0_9 = arith.constant 0 : index
    %c0_10 = arith.constant 0 : index
    %c2 = arith.constant 2 : index
    %7 = vector.load %arg1[%c0_9, %c0_10, %c2] : memref<2x4x512xbf16, #tpu.memory_space<vmem>>, vector<1x4x384xbf16>
    %8 = vector.shape_cast %7 : vector<1x4x384xbf16> to vector<4x384xbf16>
    %c8 = arith.constant 8 : index
    %c0_11 = arith.constant 0 : index
    %9 = vector.load %arg5[%c8, %c0_11] : memref<36x384xbf16, #tpu.memory_space<vmem>>, vector<4x384xbf16>
    tpu.vector_store %arg5[%c8, %c0_11], %8 {strides = array<i32>} : memref<36x384xbf16, #tpu.memory_space<vmem>>, vector<4x384xbf16>,
    %c0_12 = arith.constant 0 : index
    %c0_13 = arith.constant 0 : index
    %c18 = arith.constant 18 : index
    %10 = vector.load %arg1[%c0_12, %c0_13, %c18] : memref<2x4x512xbf16, #tpu.memory_space<vmem>>, vector<1x4x384xbf16>
    %11 = vector.shape_cast %10 : vector<1x4x384xbf16> to vector<4x384xbf16>
    %c12 = arith.constant 12 : index
    %c0_14 = arith.constant 0 : index
    %12 = vector.load %arg5[%c12, %c0_14] : memref<36x384xbf16, #tpu.memory_space<vmem>>, vector<4x384xbf16>
    tpu.vector_store %arg5[%c12, %c0_14], %11 {strides = array<i32>} : memref<36x384xbf16, #tpu.memory_space<vmem>>, vector<4x384xbf16>,
    %c0_15 = arith.constant 0 : index
    %c0_16 = arith.constant 0 : index
    %c19 = arith.constant 19 : index
    %13 = vector.load %arg1[%c0_15, %c0_16, %c19] : memref<2x4x512xbf16, #tpu.memory_space<vmem>>, vector<1x4x384xbf16>
    %14 = vector.shape_cast %13 : vector<1x4x384xbf16> to vector<4x384xbf16>
    %c16 = arith.constant 16 : index
    %c0_17 = arith.constant 0 : index
    %15 = vector.load %arg5[%c16, %c0_17] : memref<36x384xbf16, #tpu.memory_space<vmem>>, vector<4x384xbf16>
    tpu.vector_store %arg5[%c16, %c0_17], %14 {strides = array<i32>} : memref<36x384xbf16, #tpu.memory_space<vmem>>, vector<4x384xbf16>,
    %c0_18 = arith.constant 0 : index
    %c0_19 = arith.constant 0 : index
    %c20 = arith.constant 20 : index
    %16 = vector.load %arg1[%c0_18, %c0_19, %c20] : memref<2x4x512xbf16, #tpu.memory_space<vmem>>, vector<1x4x384xbf16>
    %17 = vector.shape_cast %16 : vector<1x4x384xbf16> to vector<4x384xbf16>
    %c20_20 = arith.constant 20 : index
    %c0_21 = arith.constant 0 : index
    %18 = vector.load %arg5[%c20_20, %c0_21] : memref<36x384xbf16, #tpu.memory_space<vmem>>, vector<4x384xbf16>
    tpu.vector_store %arg5[%c20_20, %c0_21], %17 {strides = array<i32>} : memref<36x384xbf16, #tpu.memory_space<vmem>>, vector<4x384xbf16>,
    %c0_22 = arith.constant 0 : index
    %c0_23 = arith.constant 0 : index
    %c36 = arith.constant 36 : index
    %19 = vector.load %arg1[%c0_22, %c0_23, %c36] : memref<2x4x512xbf16, #tpu.memory_space<vmem>>, vector<1x4x384xbf16>
    %20 = vector.shape_cast %19 : vector<1x4x384xbf16> to vector<4x384xbf16>
    %c24 = arith.constant 24 : index
    %c0_24 = arith.constant 0 : index
    %21 = vector.load %arg5[%c24, %c0_24] : memref<36x384xbf16, #tpu.memory_space<vmem>>, vector<4x384xbf16>
    tpu.vector_store %arg5[%c24, %c0_24], %20 {strides = array<i32>} : memref<36x384xbf16, #tpu.memory_space<vmem>>, vector<4x384xbf16>,
    %c0_25 = arith.constant 0 : index
    %c0_26 = arith.constant 0 : index
    %c37 = arith.constant 37 : index
    %22 = vector.load %arg1[%c0_25, %c0_26, %c37] : memref<2x4x512xbf16, #tpu.memory_space<vmem>>, vector<1x4x384xbf16>
    %23 = vector.shape_cast %22 : vector<1x4x384xbf16> to vector<4x384xbf16>
    %c28 = arith.constant 28 : index
    %c0_27 = arith.constant 0 : index
    %24 = vector.load %arg5[%c28, %c0_27] : memref<36x384xbf16, #tpu.memory_space<vmem>>, vector<4x384xbf16>
    tpu.vector_store %arg5[%c28, %c0_27], %23 {strides = array<i32>} : memref<36x384xbf16, #tpu.memory_space<vmem>>, vector<4x384xbf16>,
    %c0_28 = arith.constant 0 : index
    %c0_29 = arith.constant 0 : index
    %c38 = arith.constant 38 : index
    %25 = vector.load %arg1[%c0_28, %c0_29, %c38] : memref<2x4x512xbf16, #tpu.memory_space<vmem>>, vector<1x4x384xbf16>
    %26 = vector.shape_cast %25 : vector<1x4x384xbf16> to vector<4x384xbf16>
    %c32 = arith.constant 32 : index
    %c0_30 = arith.constant 0 : index
    %27 = vector.load %arg5[%c32, %c0_30] : memref<36x384xbf16, #tpu.memory_space<vmem>>, vector<4x384xbf16>
    tpu.vector_store %arg5[%c32, %c0_30], %26 {strides = array<i32>} : memref<36x384xbf16, #tpu.memory_space<vmem>>, vector<4x384xbf16>,
    %c0_31 = arith.constant 0 : index
    %c0_32 = arith.constant 0 : index
    %28 = vector.load %arg5[%c0_31, %c0_32] : memref<36x384xbf16, #tpu.memory_space<vmem>>, vector<36x384xbf16>
    %cst = arith.constant dense<0.000000e+00> : vector<8x384xf32>
    %29 = tpu.matmul %0, %28, %cst {dimension_numbers = #tpu.dot_dimension_numbers<[1], [0], [0], [1], [0, 0, 1, 1], [], []>} : vector<8x36xbf16>, vector<36x384xbf16>, vector<8x384xf32> -> vector<8x384xf32>
    %c0_33 = arith.constant 0 : index
    %c0_34 = arith.constant 0 : index
    %30 = vector.load %arg3[%c0_33, %c0_34] : memref<8x1xf32, #tpu.memory_space<vmem>>, vector<8x1xf32>
    %31 = vector.broadcast %30 : vector<8x1xf32> to vector<8x384xf32>
    %32 = arith.addf %29, %31 : vector<8x384xf32>
    %cst_35 = arith.constant 0.000000e+00 : f32
    %33 = vector.broadcast %cst_35 : f32 to vector<8x384xf32>
    %34 = arith.maximumf %32, %33 : vector<8x384xf32>
    %c0_36 = arith.constant 0 : index
    %c0_37 = arith.constant 0 : index
    %c0_38 = arith.constant 0 : index
    %35 = vector.load %arg4[%c0_36, %c0_37, %c0_38] : memref<2x8x384xf32, #tpu.memory_space<vmem>>, vector<1x8x384xf32>
    %36 = vector.shape_cast %35 : vector<1x8x384xf32> to vector<8x384xf32>
    %37 = vector.shape_cast %34 : vector<8x384xf32> to vector<1x8x384xf32>
    tpu.vector_store %arg4[%c0_36, %c0_37, %c0_38], %37 {strides = array<i32>} : memref<2x8x384xf32, #tpu.memory_space<vmem>>, vector<1x8x384xf32>,
    %c1_39 = arith.constant 1 : index
    %c0_40 = arith.constant 0 : index
    %c0_41 = arith.constant 0 : index
    %38 = vector.load %arg1[%c1_39, %c0_40, %c0_41] : memref<2x4x512xbf16, #tpu.memory_space<vmem>>, vector<1x4x384xbf16>
    %39 = vector.shape_cast %38 : vector<1x4x384xbf16> to vector<4x384xbf16>
    %c0_42 = arith.constant 0 : index
    %c0_43 = arith.constant 0 : index
    %40 = vector.load %arg5[%c0_42, %c0_43] : memref<36x384xbf16, #tpu.memory_space<vmem>>, vector<4x384xbf16>
    tpu.vector_store %arg5[%c0_42, %c0_43], %39 {strides = array<i32>} : memref<36x384xbf16, #tpu.memory_space<vmem>>, vector<4x384xbf16>,
    %c1_44 = arith.constant 1 : index
    %c0_45 = arith.constant 0 : index
    %c1_46 = arith.constant 1 : index
    %41 = vector.load %arg1[%c1_44, %c0_45, %c1_46] : memref<2x4x512xbf16, #tpu.memory_space<vmem>>, vector<1x4x384xbf16>
    %42 = vector.shape_cast %41 : vector<1x4x384xbf16> to vector<4x384xbf16>
    %c4_47 = arith.constant 4 : index
    %c0_48 = arith.constant 0 : index
    %43 = vector.load %arg5[%c4_47, %c0_48] : memref<36x384xbf16, #tpu.memory_space<vmem>>, vector<4x384xbf16>
    tpu.vector_store %arg5[%c4_47, %c0_48], %42 {strides = array<i32>} : memref<36x384xbf16, #tpu.memory_space<vmem>>, vector<4x384xbf16>,
    %c1_49 = arith.constant 1 : index
    %c0_50 = arith.constant 0 : index
    %c2_51 = arith.constant 2 : index
    %44 = vector.load %arg1[%c1_49, %c0_50, %c2_51] : memref<2x4x512xbf16, #tpu.memory_space<vmem>>, vector<1x4x384xbf16>
    %45 = vector.shape_cast %44 : vector<1x4x384xbf16> to vector<4x384xbf16>
    %c8_52 = arith.constant 8 : index
    %c0_53 = arith.constant 0 : index
    %46 = vector.load %arg5[%c8_52, %c0_53] : memref<36x384xbf16, #tpu.memory_space<vmem>>, vector<4x384xbf16>
    tpu.vector_store %arg5[%c8_52, %c0_53], %45 {strides = array<i32>} : memref<36x384xbf16, #tpu.memory_space<vmem>>, vector<4x384xbf16>,
    %c1_54 = arith.constant 1 : index
    %c0_55 = arith.constant 0 : index
    %c18_56 = arith.constant 18 : index
    %47 = vector.load %arg1[%c1_54, %c0_55, %c18_56] : memref<2x4x512xbf16, #tpu.memory_space<vmem>>, vector<1x4x384xbf16>
    %48 = vector.shape_cast %47 : vector<1x4x384xbf16> to vector<4x384xbf16>
    %c12_57 = arith.constant 12 : index
    %c0_58 = arith.constant 0 : index
    %49 = vector.load %arg5[%c12_57, %c0_58] : memref<36x384xbf16, #tpu.memory_space<vmem>>, vector<4x384xbf16>
    tpu.vector_store %arg5[%c12_57, %c0_58], %48 {strides = array<i32>} : memref<36x384xbf16, #tpu.memory_space<vmem>>, vector<4x384xbf16>,
    %c1_59 = arith.constant 1 : index
    %c0_60 = arith.constant 0 : index
    %c19_61 = arith.constant 19 : index
    %50 = vector.load %arg1[%c1_59, %c0_60, %c19_61] : memref<2x4x512xbf16, #tpu.memory_space<vmem>>, vector<1x4x384xbf16>
    %51 = vector.shape_cast %50 : vector<1x4x384xbf16> to vector<4x384xbf16>
    %c16_62 = arith.constant 16 : index
    %c0_63 = arith.constant 0 : index
    %52 = vector.load %arg5[%c16_62, %c0_63] : memref<36x384xbf16, #tpu.memory_space<vmem>>, vector<4x384xbf16>
    tpu.vector_store %arg5[%c16_62, %c0_63], %51 {strides = array<i32>} : memref<36x384xbf16, #tpu.memory_space<vmem>>, vector<4x384xbf16>,
    %c1_64 = arith.constant 1 : index
    %c0_65 = arith.constant 0 : index
    %c20_66 = arith.constant 20 : index
    %53 = vector.load %arg1[%c1_64, %c0_65, %c20_66] : memref<2x4x512xbf16, #tpu.memory_space<vmem>>, vector<1x4x384xbf16>
    %54 = vector.shape_cast %53 : vector<1x4x384xbf16> to vector<4x384xbf16>
    %c20_67 = arith.constant 20 : index
    %c0_68 = arith.constant 0 : index
    %55 = vector.load %arg5[%c20_67, %c0_68] : memref<36x384xbf16, #tpu.memory_space<vmem>>, vector<4x384xbf16>
    tpu.vector_store %arg5[%c20_67, %c0_68], %54 {strides = array<i32>} : memref<36x384xbf16, #tpu.memory_space<vmem>>, vector<4x384xbf16>,
    %c1_69 = arith.constant 1 : index
    %c0_70 = arith.constant 0 : index
    %c36_71 = arith.constant 36 : index
    %56 = vector.load %arg1[%c1_69, %c0_70, %c36_71] : memref<2x4x512xbf16, #tpu.memory_space<vmem>>, vector<1x4x384xbf16>
    %57 = vector.shape_cast %56 : vector<1x4x384xbf16> to vector<4x384xbf16>
    %c24_72 = arith.constant 24 : index
    %c0_73 = arith.constant 0 : index
    %58 = vector.load %arg5[%c24_72, %c0_73] : memref<36x384xbf16, #tpu.memory_space<vmem>>, vector<4x384xbf16>
    tpu.vector_store %arg5[%c24_72, %c0_73], %57 {strides = array<i32>} : memref<36x384xbf16, #tpu.memory_space<vmem>>, vector<4x384xbf16>,
    %c1_74 = arith.constant 1 : index
    %c0_75 = arith.constant 0 : index
    %c37_76 = arith.constant 37 : index
    %59 = vector.load %arg1[%c1_74, %c0_75, %c37_76] : memref<2x4x512xbf16, #tpu.memory_space<vmem>>, vector<1x4x384xbf16>
    %60 = vector.shape_cast %59 : vector<1x4x384xbf16> to vector<4x384xbf16>
    %c28_77 = arith.constant 28 : index
    %c0_78 = arith.constant 0 : index
    %61 = vector.load %arg5[%c28_77, %c0_78] : memref<36x384xbf16, #tpu.memory_space<vmem>>, vector<4x384xbf16>
    tpu.vector_store %arg5[%c28_77, %c0_78], %60 {strides = array<i32>} : memref<36x384xbf16, #tpu.memory_space<vmem>>, vector<4x384xbf16>,
    %c1_79 = arith.constant 1 : index
    %c0_80 = arith.constant 0 : index
    %c38_81 = arith.constant 38 : index
    %62 = vector.load %arg1[%c1_79, %c0_80, %c38_81] : memref<2x4x512xbf16, #tpu.memory_space<vmem>>, vector<1x4x384xbf16>
    %63 = vector.shape_cast %62 : vector<1x4x384xbf16> to vector<4x384xbf16>
    %c32_82 = arith.constant 32 : index
    %c0_83 = arith.constant 0 : index
    %64 = vector.load %arg5[%c32_82, %c0_83] : memref<36x384xbf16, #tpu.memory_space<vmem>>, vector<4x384xbf16>
    tpu.vector_store %arg5[%c32_82, %c0_83], %63 {strides = array<i32>} : memref<36x384xbf16, #tpu.memory_space<vmem>>, vector<4x384xbf16>,
    %c0_84 = arith.constant 0 : index
    %c0_85 = arith.constant 0 : index
    %65 = vector.load %arg5[%c0_84, %c0_85] : memref<36x384xbf16, #tpu.memory_space<vmem>>, vector<36x384xbf16>
    %cst_86 = arith.constant dense<0.000000e+00> : vector<8x384xf32>
    %66 = tpu.matmul %0, %65, %cst_86 {dimension_numbers = #tpu.dot_dimension_numbers<[1], [0], [0], [1], [0, 0, 1, 1], [], []>} : vector<8x36xbf16>, vector<36x384xbf16>, vector<8x384xf32> -> vector<8x384xf32>
    %c0_87 = arith.constant 0 : index
    %c0_88 = arith.constant 0 : index
    %67 = vector.load %arg3[%c0_87, %c0_88] : memref<8x1xf32, #tpu.memory_space<vmem>>, vector<8x1xf32>
    %68 = vector.broadcast %67 : vector<8x1xf32> to vector<8x384xf32>
    %69 = arith.addf %66, %68 : vector<8x384xf32>
    %cst_89 = arith.constant 0.000000e+00 : f32
    %70 = vector.broadcast %cst_89 : f32 to vector<8x384xf32>
    %71 = arith.maximumf %69, %70 : vector<8x384xf32>
    %c1_90 = arith.constant 1 : index
    %c0_91 = arith.constant 0 : index
    %c0_92 = arith.constant 0 : index
    %72 = vector.load %arg4[%c1_90, %c0_91, %c0_92] : memref<2x8x384xf32, #tpu.memory_space<vmem>>, vector<1x8x384xf32>
    %73 = vector.shape_cast %72 : vector<1x8x384xf32> to vector<8x384xf32>
    %74 = vector.shape_cast %71 : vector<8x384xf32> to vector<1x8x384xf32>
    tpu.vector_store %arg4[%c1_90, %c0_91, %c0_92], %74 {strides = array<i32>} : memref<2x8x384xf32, #tpu.memory_space<vmem>>, vector<1x8x384xf32>,
    return
  }
  func.func @transform_0(%arg0: i32) -> (i32, i32, i32) {
    %c0_i32 = arith.constant 0 : i32
    %c0_i32_0 = arith.constant 0 : i32
    %c0_i32_1 = arith.constant 0 : i32
    return %arg0, %c0_i32, %c0_i32_0 : i32, i32, i32
  }
  func.func @transform_1(%arg0: i32) -> (i32, i32) {
    %c0_i32 = arith.constant 0 : i32
    %c0_i32_0 = arith.constant 0 : i32
    %c0_i32_1 = arith.constant 0 : i32
    return %c0_i32, %c0_i32_0 : i32, i32
  }
  func.func @transform_2(%arg0: i32) -> (i32, i32) {
    %c0_i32 = arith.constant 0 : i32
    %c0_i32_0 = arith.constant 0 : i32
    %c0_i32_1 = arith.constant 0 : i32
    return %c0_i32, %c0_i32_0 : i32, i32
  }
  func.func @transform_3(%arg0: i32) -> (i32, i32, i32) {
    %c0_i32 = arith.constant 0 : i32
    %c0_i32_0 = arith.constant 0 : i32
    %c0_i32_1 = arith.constant 0 : i32
    return %arg0, %c0_i32, %c0_i32_0 : i32, i32, i32
  }
}

</mosaic_0001>

<llo_original>
// kernel: tpu_custom_call.1
$region0: #{tpu_custom_call.1}
  #allocation0 [shape = 'u32[]', space=smem, size = 0x4, offset = 0x4, fixed_abs, tag = 'smem constant byte address 0x4 - core index']
  #allocation1 [shape = 'u32[144,128]{1,0:T(1,128)}', space=vmem, size = 0x12000, scoped, tag = 'internal scratch']
  #allocation2 [shape = 'bf16[36,384]{1,0:T(8,128)(2,1)}', space=vmem, size = 0x7800, scoped, tag = 'scratch operand']
  %s0 = inlined_call_operand.hbm [shape: bf16[2,4,512], index: 0, kind: input, shape index: {}]
  %s1 = inlined_call_operand.vmem [shape: bf16[8,36], index: 1, kind: input, shape index: {}]
  %s2 = inlined_call_operand.vmem [shape: f32[8,1], index: 2, kind: input, shape index: {}]
  %s3 = inlined_call_operand.hbm [shape: f32[2,8,384], index: 3, kind: output, shape index: {}]
  %s4 = sld [smem:[#allocation0]]
  $region26: #{tpu_custom_call.1} parent=0
    _
  %s6 = ssub.s32 1, %s4
  %s7 = scalar_select 0, %s6, %s4
  $region1: #{tpu_custom_call.1} parent=0
    #allocation3 [shape = 'u8[8192]{0}', space=vmem, size = 0x2000, scoped, tag = 'input window, operand 0, single buffered']
    #allocation4 [shape = 's32[1]{0}', space=sflag, size = 0x4, scoped, tag = 'scoped memory for tpu_custom_call.1']
    #allocation5 [shape = 's32[1]{0}', space=sflag, size = 0x4, scoped, tag = 'scoped memory for tpu_custom_call.1']
    #allocation6 [shape = 'u8[24576]{0}', space=vmem, size = 0x6000, scoped, tag = 'output window, operand 0, single buffered']
    %8 = vsyncpa [#allocation4], 0
    %9 = vsyncpa [#allocation5], 0
    // Predicated region
    $region2: #{tpu_custom_call.1} parent=1 // pred_check
      _
    $region3: #{tpu_custom_call.1} parent=1 // pred_check_branch
      %11 = sbr.rel (0) target = $region5
    $region4: #{tpu_custom_call.1} parent=1 // pred_region
      %s13 = ssub.s32 256, 256
      %14 = vsyncadd [#allocation4], %s13
      %s15 = sshll.u32 [#allocation3], 4
      %s16 = int_to_ptr.vmem [resolvable:$true] %s15
      %21 = dma.hbm_to_vmem [thread:$0]  %s0, 256, %s16, [#allocation4], 128, 128, 8
    $region5: #{tpu_custom_call.1} parent=1 // pred_fallthru
      _
    // Predicated region
    $region6: #{tpu_custom_call.1} parent=1 // pred_check
      _
    $region7: #{tpu_custom_call.1} parent=1 // pred_check_branch
      %23 = sbr.rel (0) target = $region9
    $region8: #{tpu_custom_call.1} parent=1 // pred_region
      _
    $region9: #{tpu_custom_call.1} parent=1 // pred_fallthru
      _
    // Predicated region
    $region10: #{tpu_custom_call.1} parent=1 // pred_check
      _
    $region11: #{tpu_custom_call.1} parent=1 // pred_check_branch
      %25 = sbr.rel (0) target = $region13
    $region12: #{tpu_custom_call.1} parent=1 // pred_region
      _
    $region13: #{tpu_custom_call.1} parent=1 // pred_fallthru
      _
    // Predicated region
    $region14: #{tpu_custom_call.1} parent=1 // pred_check
      _
    $region15: #{tpu_custom_call.1} parent=1 // pred_check_branch
      %27 = sbr.rel (0) target = $region17
    $region16: #{tpu_custom_call.1} parent=1 // pred_region
      %28 = dma.done [#allocation4], 256
    $region17: #{tpu_custom_call.1} parent=1 // pred_fallthru
      _
    %v30 = vld [vmem:[%s1] sm:$0xf]
    %v31 = vld [vmem:[#allocation3] sm:$0x3f]
    %v33 = vcombine.high %v31, %v31
    %v35 = vunpack.c.l.s4 1983009808
    %v36 = vunpack.c.0.s8 %v35
    %v37 = vlaneseq
    %v38 = vshrl.u32 %v37, 7
    %v39 = vsub.s32 %v36, %v38
    %v40 = vrot.slane %v31, %v39
    %v42 = vunpack.c.l.s4 1983009808
    %v43 = vunpack.c.0.s8 %v42
    %v44 = vlaneseq
    %v45 = vshrl.u32 %v44, 7
    %v46 = vsub.s32 %v43, %v45
    %v47 = vrot.slane %v33, %v46
    %50 = vst [vmem:[#allocation2] sm:$0x33] %v40
    %51 = vst [vmem:[#allocation2 + $0x8] sm:$0x3] %v47
    %v52 = vld [vmem:[#allocation3] sm:$0xff]
    %v54 = vcombine.low %v52, %v52
    %v56 = vunpack.c.l.s4 1983009808
    %v57 = vunpack.c.0.s8 %v56
    %v58 = vlaneseq
    %v59 = vshrl.u32 %v58, 7
    %v60 = vsub.s32 %v57, %v59
    %v61 = vrot.slane %v54, %v60
    %v63 = vunpack.c.l.s4 1983009808
    %v64 = vunpack.c.0.s8 %v63
    %v65 = vlaneseq
    %v66 = vshrl.u32 %v65, 7
    %v67 = vsub.s32 %v64, %v66
    %v68 = vrot.slane %v52, %v67
    %69 = vrot.lane.b32.xlu0 %v61, 127
    %v70 = vpop.permute.xlu0 %69
    %71 = vrot.lane.b32.xlu0 %v68, 127
    %v72 = vpop.permute.xlu0 %71
    %v73 = vrot.slane %v70, 4
    %v74 = vrot.slane %v72, 4
    %vm75 = vcmask 1043456
    %v76 = vsel %vm75, %v73, %v74
    %vm77 = vcmask 1039360
    %v78 = vsel %vm77, %v70, %v76
    %v79 = vsel %vm77, %v72, %v74
    %82 = vst [vmem:[#allocation2] sm:$0xcc] %v78
    %83 = vst [vmem:[#allocation2 + $0x8] sm:$0xc] %v79
    %v84 = vld [vmem:[#allocation3] sm:$0xff]
    %v86 = vcombine.high %v84, %v84
    %v88 = vunpack.c.l.s4 1983009808
    %v89 = vunpack.c.0.s8 %v88
    %v90 = vlaneseq
    %v91 = vshrl.u32 %v90, 7
    %v92 = vsub.s32 %v89, %v91
    %v93 = vrot.slane %v84, %v92
    %v95 = vunpack.c.l.s4 1983009808
    %v96 = vunpack.c.0.s8 %v95
    %v97 = vlaneseq
    %v98 = vshrl.u32 %v97, 7
    %v99 = vsub.s32 %v96, %v98
    %v100 = vrot.slane %v86, %v99
    %101 = vrot.lane.b32.xlu0 %v93, 126
    %v102 = vpop.permute.xlu0 %101
    %103 = vrot.lane.b32.xlu0 %v100, 126
    %v104 = vpop.permute.xlu0 %103
    %v105 = vrot.slane %v102, 4
    %v106 = vrot.slane %v104, 4
    %v107 = vsel %vm75, %v105, %v106
    %vm108 = vcmask 1031168
    %v109 = vsel %vm108, %v102, %v107
    %v110 = vsel %vm108, %v104, %v106
    %113 = vst [vmem:[#allocation2 + $0xc] sm:$0x33] %v109
    %114 = vst [vmem:[#allocation2 + $0x14] sm:$0x3] %v110
    %v115 = vld [vmem:[#allocation3] sm:$0xff]
    %v117 = vcombine.low %v115, %v115
    %v119 = vunpack.c.l.s4 1983009808
    %v120 = vunpack.c.0.s8 %v119
    %v121 = vlaneseq
    %v122 = vshrl.u32 %v121, 7
    %v123 = vsub.s32 %v120, %v122
    %v124 = vrot.slane %v117, %v123
    %v126 = vunpack.c.l.s4 1983009808
    %v127 = vunpack.c.0.s8 %v126
    %v128 = vlaneseq
    %v129 = vshrl.u32 %v128, 7
    %v130 = vsub.s32 %v127, %v129
    %v131 = vrot.slane %v115, %v130
    %132 = vrot.lane.b32.xlu0 %v124, 110
    %v133 = vpop.permute.xlu0 %132
    %134 = vrot.lane.b32.xlu0 %v131, 110
    %v135 = vpop.permute.xlu0 %134
    %v136 = vrot.slane %v133, 4
    %v137 = vrot.slane %v135, 4
    %v138 = vsel %vm75, %v136, %v137
    %vm139 = vcmask 900096
    %v140 = vsel %vm139, %v133, %v138
    %v141 = vsel %vm139, %v135, %v137
    %144 = vst [vmem:[#allocation2 + $0xc] sm:$0xcc] %v140
    %145 = vst [vmem:[#allocation2 + $0x14] sm:$0xc] %v141
    %v146 = vld [vmem:[#allocation3] sm:$0xff]
    %v148 = vcombine.high %v146, %v146
    %v150 = vunpack.c.l.s4 1983009808
    %v151 = vunpack.c.0.s8 %v150
    %v152 = vlaneseq
    %v153 = vshrl.u32 %v152, 7
    %v154 = vsub.s32 %v151, %v153
    %v155 = vrot.slane %v146, %v154
    %v157 = vunpack.c.l.s4 1983009808
    %v158 = vunpack.c.0.s8 %v157
    %v159 = vlaneseq
    %v160 = vshrl.u32 %v159, 7
    %v161 = vsub.s32 %v158, %v160
    %v162 = vrot.slane %v148, %v161
    %163 = vrot.lane.b32.xlu0 %v155, 109
    %v164 = vpop.permute.xlu0 %163
    %165 = vrot.lane.b32.xlu0 %v162, 109
    %v166 = vpop.permute.xlu0 %165
    %v167 = vrot.slane %v164, 4
    %v168 = vrot.slane %v166, 4
    %v169 = vsel %vm75, %v167, %v168
    %vm170 = vcmask 891904
    %v171 = vsel %vm170, %v164, %v169
    %v172 = vsel %vm170, %v166, %v168
    %175 = vst [vmem:[#allocation2 + $0x18] sm:$0x33] %v171
    %176 = vst [vmem:[#allocation2 + $0x20] sm:$0x3] %v172
    %v177 = vld [vmem:[#allocation3] sm:$0xff]
    %v179 = vcombine.low %v177, %v177
    %v181 = vunpack.c.l.s4 1983009808
    %v182 = vunpack.c.0.s8 %v181
    %v183 = vlaneseq
    %v184 = vshrl.u32 %v183, 7
    %v185 = vsub.s32 %v182, %v184
    %v186 = vrot.slane %v179, %v185
    %v188 = vunpack.c.l.s4 1983009808
    %v189 = vunpack.c.0.s8 %v188
    %v190 = vlaneseq
    %v191 = vshrl.u32 %v190, 7
    %v192 = vsub.s32 %v189, %v191
    %v193 = vrot.slane %v177, %v192
    %194 = vrot.lane.b32.xlu0 %v186, 108
    %v195 = vpop.permute.xlu0 %194
    %196 = vrot.lane.b32.xlu0 %v193, 108
    %v197 = vpop.permute.xlu0 %196
    %v198 = vrot.slane %v195, 4
    %v199 = vrot.slane %v197, 4
    %v200 = vsel %vm75, %v198, %v199
    %vm201 = vcmask 883712
    %v202 = vsel %vm201, %v195, %v200
    %v203 = vsel %vm201, %v197, %v199
    %206 = vst [vmem:[#allocation2 + $0x18] sm:$0xcc] %v202
    %207 = vst [vmem:[#allocation2 + $0x20] sm:$0xc] %v203
    %v208 = vld [vmem:[#allocation3] sm:$0xff]
    %v210 = vcombine.high %v208, %v208
    %v212 = vunpack.c.l.s4 1983009808
    %v213 = vunpack.c.0.s8 %v212
    %v214 = vlaneseq
    %v215 = vshrl.u32 %v214, 7
    %v216 = vsub.s32 %v213, %v215
    %v217 = vrot.slane %v208, %v216
    %v219 = vunpack.c.l.s4 1983009808
    %v220 = vunpack.c.0.s8 %v219
    %v221 = vlaneseq
    %v222 = vshrl.u32 %v221, 7
    %v223 = vsub.s32 %v220, %v222
    %v224 = vrot.slane %v210, %v223
    %225 = vrot.lane.b32.xlu0 %v217, 92
    %v226 = vpop.permute.xlu0 %225
    %227 = vrot.lane.b32.xlu0 %v224, 92
    %v228 = vpop.permute.xlu0 %227
    %v229 = vrot.slane %v226, 4
    %v230 = vrot.slane %v228, 4
    %v231 = vsel %vm75, %v229, %v230
    %vm232 = vcmask 752640
    %v233 = vsel %vm232, %v226, %v231
    %v234 = vsel %vm232, %v228, %v230
    %237 = vst [vmem:[#allocation2 + $0x24] sm:$0x33] %v233
    %238 = vst [vmem:[#allocation2 + $0x2c] sm:$0x3] %v234
    %v239 = vld [vmem:[#allocation3] sm:$0xff]
    %v241 = vcombine.low %v239, %v239
    %v243 = vunpack.c.l.s4 1983009808
    %v244 = vunpack.c.0.s8 %v243
    %v245 = vlaneseq
    %v246 = vshrl.u32 %v245, 7
    %v247 = vsub.s32 %v244, %v246
    %v248 = vrot.slane %v241, %v247
    %v250 = vunpack.c.l.s4 1983009808
    %v251 = vunpack.c.0.s8 %v250
    %v252 = vlaneseq
    %v253 = vshrl.u32 %v252, 7
    %v254 = vsub.s32 %v251, %v253
    %v255 = vrot.slane %v239, %v254
    %256 = vrot.lane.b32.xlu0 %v248, 91
    %v257 = vpop.permute.xlu0 %256
    %258 = vrot.lane.b32.xlu0 %v255, 91
    %v259 = vpop.permute.xlu0 %258
    %v260 = vrot.slane %v257, 4
    %v261 = vrot.slane %v259, 4
    %v262 = vsel %vm75, %v260, %v261
    %vm263 = vcmask 744448
    %v264 = vsel %vm263, %v257, %v262
    %v265 = vsel %vm263, %v259, %v261
    %268 = vst [vmem:[#allocation2 + $0x24] sm:$0xcc] %v264
    %269 = vst [vmem:[#allocation2 + $0x2c] sm:$0xc] %v265
    %v270 = vld [vmem:[#allocation3] sm:$0xff]
    %v272 = vcombine.high %v270, %v270
    %v274 = vunpack.c.l.s4 1983009808
    %v275 = vunpack.c.0.s8 %v274
    %v276 = vlaneseq
    %v277 = vshrl.u32 %v276, 7
    %v278 = vsub.s32 %v275, %v277
    %v279 = vrot.slane %v270, %v278
    %v281 = vunpack.c.l.s4 1983009808
    %v282 = vunpack.c.0.s8 %v281
    %v283 = vlaneseq
    %v284 = vshrl.u32 %v283, 7
    %v285 = vsub.s32 %v282, %v284
    %v286 = vrot.slane %v272, %v285
    %287 = vrot.lane.b32.xlu0 %v279, 90
    %v288 = vpop.permute.xlu0 %287
    %289 = vrot.lane.b32.xlu0 %v286, 90
    %v290 = vpop.permute.xlu0 %289
    %v291 = vrot.slane %v288, 4
    %v292 = vrot.slane %v290, 4
    %v293 = vsel %vm75, %v291, %v292
    %vm294 = vcmask 736256
    %v295 = vsel %vm294, %v288, %v293
    %v296 = vsel %vm294, %v290, %v292
    %299 = vst [vmem:[#allocation2 + $0x30] sm:$0x33] %v295
    %300 = vst [vmem:[#allocation2 + $0x38] sm:$0x3] %v296
    %v301 = vld [vmem:[#allocation2] sm:$0xff]
    %v302 = vld [vmem:[#allocation2 + $0x8] sm:$0xf]
    %v303 = vld [vmem:[#allocation2 + $0xc] sm:$0xff]
    %v304 = vld [vmem:[#allocation2 + $0x14] sm:$0xf]
    %v305 = vld [vmem:[#allocation2 + $0x18] sm:$0xff]
    %v306 = vld [vmem:[#allocation2 + $0x20] sm:$0xf]
    %v307 = vld [vmem:[#allocation2 + $0x24] sm:$0xff]
    %v308 = vld [vmem:[#allocation2 + $0x2c] sm:$0xf]
    %v309 = vld [vmem:[#allocation2 + $0x30] sm:$0x33]
    %v310 = vld [vmem:[#allocation2 + $0x38] sm:$0x3]
    %v311 = vld [vmem:[%s2] sm:$0xff]
    %313 = vset.pattern.permute.xlu0 0
    %314 = vperm.xlu0 %313, %v311
    %v315 = vpop.permute.xlu0 %314
    %v327 = vunpack.c.l.b16 %v301
    %v328 = vunpack.c.h.b16 %v301
    %v329 = vunpack.c.l.b16 %v302
    %v330 = vunpack.c.l.b16 %v303
    %v331 = vunpack.c.h.b16 %v303
    %v332 = vunpack.c.l.b16 %v304
    %v333 = vunpack.c.l.b16 %v305
    %v334 = vunpack.c.h.b16 %v305
    %v335 = vunpack.c.l.b16 %v306
    %v336 = vunpack.c.l.b16 %v307
    %v337 = vunpack.c.h.b16 %v307
    %v338 = vunpack.c.l.b16 %v308
    %v339 = vunpack.c.l.b16 %v309
    %v340 = vunpack.c.h.b16 %v309
    %v341 = vunpack.c.l.b16 %v310
    %v342 = vpack.c.b16 %v330, %v327
    %v343 = vpack.c.b16 %v331, %v328
    %v344 = vpack.c.b16 %v332, %v329
    %v345 = vpack.c.b16 %v336, %v333
    %v346 = vpack.c.b16 %v337, %v334
    %v347 = vpack.c.b16 %v338, %v335
    %v348 = vpack.c.b16 %v339, %v339
    %v349 = vpack.c.b16 %v340, %v340
    %v350 = vpack.c.b16 %v341, %v341
    %vm357 = vcmask 293888
    %v359 = vsel %vm357, %v30, 0
    %vm361 = vcmask 1041408
    %v363 = vsel %vm361, %v348, 0
    %v366 = vsel %vm361, %v349, 0
    %v369 = vsel %vm361, %v350, 0
    %371 = vmatprep.subr.bf16.mxu0 0
    %372 = vmatpush1.bf16.msra.mxu0 0
    %373 = vmatprep.subr.bf16.mxu0 0
    %374 = vmatpush1.bf16.msra.mxu0 0
    %375 = vmatprep.subr.bf16.mxu0 0
    %376 = vmatpush1.bf16.msra.mxu0 0
    %377 = vmatprep.subr.bf16.mxu0 0
    %378 = vmatpush1.bf16.msra.mxu0 0
    %379 = vmatprep.subr.bf16.mxu0 0
    %380 = vmatpush1.bf16.msra.mxu0 0
    %381 = vmatprep.subr.bf16.mxu0 %v366
    %382 = vmatpush1.bf16.msra.mxu0 %v363
    %383 = vmatprep.subr.bf16.mxu0 %v346
    %384 = vmatpush1.bf16.msra.mxu0 %v345
    %385 = vmatprep.subr.bf16.mxu0 %v343
    %386 = vmatpush1.bf16.msra.mxu0 %v342
    %387 = vmatprep.subr.bf16.mxu0 0
    %388 = vmatpush2.bf16.msra.mxu0 0
    %389 = vmatprep.subr.bf16.mxu0 0
    %390 = vmatpush2.bf16.msra.mxu0 0
    %391 = vmatprep.subr.bf16.mxu0 0
    %392 = vmatpush2.bf16.msra.mxu0 0
    %393 = vmatprep.subr.bf16.mxu0 0
    %394 = vmatpush2.bf16.msra.mxu0 0
    %395 = vmatprep.subr.bf16.mxu0 0
    %396 = vmatpush2.bf16.msra.mxu0 0
    %397 = vmatprep.subr.bf16.mxu0 0
    %398 = vmatpush2.bf16.msra.mxu0 0
    %399 = vmatprep.subr.bf16.mxu0 0
    %400 = vmatpush2.bf16.msra.mxu0 0
    %401 = vmatprep.subr.bf16.mxu0 0
    %402 = vmatpush2.bf16.msra.mxu0 0
    %403 = vmatprep.mubr.bf16.mxu0 0
    %404 = vmatmul.mubr.bf16.gmra.mxu0 %v359
    %v405 = vpop.f32.mrf.mxu0
    %v406 = vadd.f32 %v315, %v405
    %v407 = vpop.f32.mrf.mxu0
    %v408 = vadd.f32 %v315, %v407
    %v409 = vpop.f32.mrf.mxu0
    %v410 = vpop.f32.mrf.mxu0
    %411 = vdwg.mxu0
    %412 = vmatprep.subr.bf16.mxu0 0
    %413 = vmatpush1.bf16.msra.mxu0 0
    %414 = vmatprep.subr.bf16.mxu0 0
    %415 = vmatpush1.bf16.msra.mxu0 0
    %416 = vmatprep.subr.bf16.mxu0 0
    %417 = vmatpush1.bf16.msra.mxu0 0
    %418 = vmatprep.subr.bf16.mxu0 0
    %419 = vmatpush1.bf16.msra.mxu0 0
    %420 = vmatprep.subr.bf16.mxu0 0
    %421 = vmatpush1.bf16.msra.mxu0 0
    %422 = vmatprep.subr.bf16.mxu0 0
    %423 = vmatpush1.bf16.msra.mxu0 %v369
    %424 = vmatprep.subr.bf16.mxu0 0
    %425 = vmatpush1.bf16.msra.mxu0 %v347
    %426 = vmatprep.subr.bf16.mxu0 0
    %427 = vmatpush1.bf16.msra.mxu0 %v344
    %428 = vmatprep.subr.bf16.mxu0 0
    %429 = vmatpush2.bf16.msra.mxu0 0
    %430 = vmatprep.subr.bf16.mxu0 0
    %431 = vmatpush2.bf16.msra.mxu0 0
    %432 = vmatprep.subr.bf16.mxu0 0
    %433 = vmatpush2.bf16.msra.mxu0 0
    %434 = vmatprep.subr.bf16.mxu0 0
    %435 = vmatpush2.bf16.msra.mxu0 0
    %436 = vmatprep.subr.bf16.mxu0 0
    %437 = vmatpush2.bf16.msra.mxu0 0
    %438 = vmatprep.subr.bf16.mxu0 0
    %439 = vmatpush2.bf16.msra.mxu0 0
    %440 = vmatprep.subr.bf16.mxu0 0
    %441 = vmatpush2.bf16.msra.mxu0 0
    %442 = vmatprep.subr.bf16.mxu0 0
    %443 = vmatpush2.bf16.msra.mxu0 0
    %444 = vmatprep.mubr.bf16.mxu0 0
    %445 = vmatmul.mubr.bf16.gmra.mxu0 %v359
    %v446 = vpop.f32.mrf.mxu0
    %v447 = vadd.f32 %v315, %v446
    %v448 = vpop.f32.mrf.mxu0
    %v449 = vpop.f32.mrf.mxu0
    %v450 = vpop.f32.mrf.mxu0
    %451 = vdwg.mxu0
    %v452 = vmax.f32 %v406, 0.0
    %v453 = vmax.f32 %v408, 0.0
    %v454 = vmax.f32 %v447, 0.0
    %455 = vst [vmem:[#allocation6] sm:$0xff] %v452
    %456 = vst [vmem:[#allocation6 + $0x8] sm:$0xff] %v453
    %457 = vst [vmem:[#allocation6 + $0x10] sm:$0xff] %v454
    %s458 = scalar_lea.vmem [#allocation3], 8
    %v459 = vld [vmem:[%s458] sm:$0x3f]
    %v461 = vcombine.high %v459, %v459
    %v463 = vunpack.c.l.s4 1983009808
    %v464 = vunpack.c.0.s8 %v463
    %v465 = vlaneseq
    %v466 = vshrl.u32 %v465, 7
    %v467 = vsub.s32 %v464, %v466
    %v468 = vrot.slane %v459, %v467
    %v470 = vunpack.c.l.s4 1983009808
    %v471 = vunpack.c.0.s8 %v470
    %v472 = vlaneseq
    %v473 = vshrl.u32 %v472, 7
    %v474 = vsub.s32 %v471, %v473
    %v475 = vrot.slane %v461, %v474
    %478 = vst [vmem:[#allocation2] sm:$0x33] %v468
    %479 = vst [vmem:[#allocation2 + $0x8] sm:$0x3] %v475
    %v480 = vld [vmem:[%s458] sm:$0xff]
    %v482 = vcombine.low %v480, %v480
    %v484 = vunpack.c.l.s4 1983009808
    %v485 = vunpack.c.0.s8 %v484
    %v486 = vlaneseq
    %v487 = vshrl.u32 %v486, 7
    %v488 = vsub.s32 %v485, %v487
    %v489 = vrot.slane %v482, %v488
    %v491 = vunpack.c.l.s4 1983009808
    %v492 = vunpack.c.0.s8 %v491
    %v493 = vlaneseq
    %v494 = vshrl.u32 %v493, 7
    %v495 = vsub.s32 %v492, %v494
    %v496 = vrot.slane %v480, %v495
    %497 = vrot.lane.b32.xlu0 %v489, 127
    %v498 = vpop.permute.xlu0 %497
    %499 = vrot.lane.b32.xlu0 %v496, 127
    %v500 = vpop.permute.xlu0 %499
    %v501 = vrot.slane %v498, 4
    %v502 = vrot.slane %v500, 4
    %v503 = vsel %vm75, %v501, %v502
    %v504 = vsel %vm77, %v498, %v503
    %v505 = vsel %vm77, %v500, %v502
    %508 = vst [vmem:[#allocation2] sm:$0xcc] %v504
    %509 = vst [vmem:[#allocation2 + $0x8] sm:$0xc] %v505
    %v510 = vld [vmem:[%s458] sm:$0xff]
    %v512 = vcombine.high %v510, %v510
    %v514 = vunpack.c.l.s4 1983009808
    %v515 = vunpack.c.0.s8 %v514
    %v516 = vlaneseq
    %v517 = vshrl.u32 %v516, 7
    %v518 = vsub.s32 %v515, %v517
    %v519 = vrot.slane %v510, %v518
    %v521 = vunpack.c.l.s4 1983009808
    %v522 = vunpack.c.0.s8 %v521
    %v523 = vlaneseq
    %v524 = vshrl.u32 %v523, 7
    %v525 = vsub.s32 %v522, %v524
    %v526 = vrot.slane %v512, %v525
    %527 = vrot.lane.b32.xlu0 %v519, 126
    %v528 = vpop.permute.xlu0 %527
    %529 = vrot.lane.b32.xlu0 %v526, 126
    %v530 = vpop.permute.xlu0 %529
    %v531 = vrot.slane %v528, 4
    %v532 = vrot.slane %v530, 4
    %v533 = vsel %vm75, %v531, %v532
    %v534 = vsel %vm108, %v528, %v533
    %v535 = vsel %vm108, %v530, %v532
    %538 = vst [vmem:[#allocation2 + $0xc] sm:$0x33] %v534
    %539 = vst [vmem:[#allocation2 + $0x14] sm:$0x3] %v535
    %v540 = vld [vmem:[%s458] sm:$0xff]
    %v542 = vcombine.low %v540, %v540
    %v544 = vunpack.c.l.s4 1983009808
    %v545 = vunpack.c.0.s8 %v544
    %v546 = vlaneseq
    %v547 = vshrl.u32 %v546, 7
    %v548 = vsub.s32 %v545, %v547
    %v549 = vrot.slane %v542, %v548
    %v551 = vunpack.c.l.s4 1983009808
    %v552 = vunpack.c.0.s8 %v551
    %v553 = vlaneseq
    %v554 = vshrl.u32 %v553, 7
    %v555 = vsub.s32 %v552, %v554
    %v556 = vrot.slane %v540, %v555
    %557 = vrot.lane.b32.xlu0 %v549, 110
    %v558 = vpop.permute.xlu0 %557
    %559 = vrot.lane.b32.xlu0 %v556, 110
    %v560 = vpop.permute.xlu0 %559
    %v561 = vrot.slane %v558, 4
    %v562 = vrot.slane %v560, 4
    %v563 = vsel %vm75, %v561, %v562
    %v564 = vsel %vm139, %v558, %v563
    %v565 = vsel %vm139, %v560, %v562
    %568 = vst [vmem:[#allocation2 + $0xc] sm:$0xcc] %v564
    %569 = vst [vmem:[#allocation2 + $0x14] sm:$0xc] %v565
    %v570 = vld [vmem:[%s458] sm:$0xff]
    %v572 = vcombine.high %v570, %v570
    %v574 = vunpack.c.l.s4 1983009808
    %v575 = vunpack.c.0.s8 %v574
    %v576 = vlaneseq
    %v577 = vshrl.u32 %v576, 7
    %v578 = vsub.s32 %v575, %v577
    %v579 = vrot.slane %v570, %v578
    %v581 = vunpack.c.l.s4 1983009808
    %v582 = vunpack.c.0.s8 %v581
    %v583 = vlaneseq
    %v584 = vshrl.u32 %v583, 7
    %v585 = vsub.s32 %v582, %v584
    %v586 = vrot.slane %v572, %v585
    %587 = vrot.lane.b32.xlu0 %v579, 109
    %v588 = vpop.permute.xlu0 %587
    %589 = vrot.lane.b32.xlu0 %v586, 109
    %v590 = vpop.permute.xlu0 %589
    %v591 = vrot.slane %v588, 4
    %v592 = vrot.slane %v590, 4
    %v593 = vsel %vm75, %v591, %v592
    %v594 = vsel %vm170, %v588, %v593
    %v595 = vsel %vm170, %v590, %v592
    %598 = vst [vmem:[#allocation2 + $0x18] sm:$0x33] %v594
    %599 = vst [vmem:[#allocation2 + $0x20] sm:$0x3] %v595
    %v600 = vld [vmem:[%s458] sm:$0xff]
    %v602 = vcombine.low %v600, %v600
    %v604 = vunpack.c.l.s4 1983009808
    %v605 = vunpack.c.0.s8 %v604
    %v606 = vlaneseq
    %v607 = vshrl.u32 %v606, 7
    %v608 = vsub.s32 %v605, %v607
    %v609 = vrot.slane %v602, %v608
    %v611 = vunpack.c.l.s4 1983009808
    %v612 = vunpack.c.0.s8 %v611
    %v613 = vlaneseq
    %v614 = vshrl.u32 %v613, 7
    %v615 = vsub.s32 %v612, %v614
    %v616 = vrot.slane %v600, %v615
    %617 = vrot.lane.b32.xlu0 %v609, 108
    %v618 = vpop.permute.xlu0 %617
    %619 = vrot.lane.b32.xlu0 %v616, 108
    %v620 = vpop.permute.xlu0 %619
    %v621 = vrot.slane %v618, 4
    %v622 = vrot.slane %v620, 4
    %v623 = vsel %vm75, %v621, %v622
    %v624 = vsel %vm201, %v618, %v623
    %v625 = vsel %vm201, %v620, %v622
    %628 = vst [vmem:[#allocation2 + $0x18] sm:$0xcc] %v624
    %629 = vst [vmem:[#allocation2 + $0x20] sm:$0xc] %v625
    %v630 = vld [vmem:[%s458] sm:$0xff]
    %v632 = vcombine.high %v630, %v630
    %v634 = vunpack.c.l.s4 1983009808
    %v635 = vunpack.c.0.s8 %v634
    %v636 = vlaneseq
    %v637 = vshrl.u32 %v636, 7
    %v638 = vsub.s32 %v635, %v637
    %v639 = vrot.slane %v630, %v638
    %v641 = vunpack.c.l.s4 1983009808
    %v642 = vunpack.c.0.s8 %v641
    %v643 = vlaneseq
    %v644 = vshrl.u32 %v643, 7
    %v645 = vsub.s32 %v642, %v644
    %v646 = vrot.slane %v632, %v645
    %647 = vrot.lane.b32.xlu0 %v639, 92
    %v648 = vpop.permute.xlu0 %647
    %649 = vrot.lane.b32.xlu0 %v646, 92
    %v650 = vpop.permute.xlu0 %649
    %v651 = vrot.slane %v648, 4
    %v652 = vrot.slane %v650, 4
    %v653 = vsel %vm75, %v651, %v652
    %v654 = vsel %vm232, %v648, %v653
    %v655 = vsel %vm232, %v650, %v652
    %658 = vst [vmem:[#allocation2 + $0x24] sm:$0x33] %v654
    %659 = vst [vmem:[#allocation2 + $0x2c] sm:$0x3] %v655
    %v660 = vld [vmem:[%s458] sm:$0xff]
    %v662 = vcombine.low %v660, %v660
    %v664 = vunpack.c.l.s4 1983009808
    %v665 = vunpack.c.0.s8 %v664
    %v666 = vlaneseq
    %v667 = vshrl.u32 %v666, 7
    %v668 = vsub.s32 %v665, %v667
    %v669 = vrot.slane %v662, %v668
    %v671 = vunpack.c.l.s4 1983009808
    %v672 = vunpack.c.0.s8 %v671
    %v673 = vlaneseq
    %v674 = vshrl.u32 %v673, 7
    %v675 = vsub.s32 %v672, %v674
    %v676 = vrot.slane %v660, %v675
    %677 = vrot.lane.b32.xlu0 %v669, 91
    %v678 = vpop.permute.xlu0 %677
    %679 = vrot.lane.b32.xlu0 %v676, 91
    %v680 = vpop.permute.xlu0 %679
    %v681 = vrot.slane %v678, 4
    %v682 = vrot.slane %v680, 4
    %v683 = vsel %vm75, %v681, %v682
    %v684 = vsel %vm263, %v678, %v683
    %v685 = vsel %vm263, %v680, %v682
    %688 = vst [vmem:[#allocation2 + $0x24] sm:$0xcc] %v684
    %689 = vst [vmem:[#allocation2 + $0x2c] sm:$0xc] %v685
    %v690 = vld [vmem:[%s458] sm:$0xff]
    %v692 = vcombine.high %v690, %v690
    %v694 = vunpack.c.l.s4 1983009808
    %v695 = vunpack.c.0.s8 %v694
    %v696 = vlaneseq
    %v697 = vshrl.u32 %v696, 7
    %v698 = vsub.s32 %v695, %v697
    %v699 = vrot.slane %v690, %v698
    %v701 = vunpack.c.l.s4 1983009808
    %v702 = vunpack.c.0.s8 %v701
    %v703 = vlaneseq
    %v704 = vshrl.u32 %v703, 7
    %v705 = vsub.s32 %v702, %v704
    %v706 = vrot.slane %v692, %v705
    %707 = vrot.lane.b32.xlu0 %v699, 90
    %v708 = vpop.permute.xlu0 %707
    %709 = vrot.lane.b32.xlu0 %v706, 90
    %v710 = vpop.permute.xlu0 %709
    %v711 = vrot.slane %v708, 4
    %v712 = vrot.slane %v710, 4
    %v713 = vsel %vm75, %v711, %v712
    %v714 = vsel %vm294, %v708, %v713
    %v715 = vsel %vm294, %v710, %v712
    %718 = vst [vmem:[#allocation2 + $0x30] sm:$0x33] %v714
    %719 = vst [vmem:[#allocation2 + $0x38] sm:$0x3] %v715
    %v720 = vld [vmem:[#allocation2] sm:$0xff]
    %v721 = vld [vmem:[#allocation2 + $0x8] sm:$0xf]
    %v722 = vld [vmem:[#allocation2 + $0xc] sm:$0xff]
    %v723 = vld [vmem:[#allocation2 + $0x14] sm:$0xf]
    %v724 = vld [vmem:[#allocation2 + $0x18] sm:$0xff]
    %v725 = vld [vmem:[#allocation2 + $0x20] sm:$0xf]
    %v726 = vld [vmem:[#allocation2 + $0x24] sm:$0xff]
    %v727 = vld [vmem:[#allocation2 + $0x2c] sm:$0xf]
    %v728 = vld [vmem:[#allocation2 + $0x30] sm:$0x33]
    %v729 = vld [vmem:[#allocation2 + $0x38] sm:$0x3]
    %v730 = vld [vmem:[%s2] sm:$0xff]
    %732 = vset.pattern.permute.xlu0 0
    %733 = vperm.xlu0 %732, %v730
    %v734 = vpop.permute.xlu0 %733
    %v746 = vunpack.c.l.b16 %v720
    %v747 = vunpack.c.h.b16 %v720
    %v748 = vunpack.c.l.b16 %v721
    %v749 = vunpack.c.l.b16 %v722
    %v750 = vunpack.c.h.b16 %v722
    %v751 = vunpack.c.l.b16 %v723
    %v752 = vunpack.c.l.b16 %v724
    %v753 = vunpack.c.h.b16 %v724
    %v754 = vunpack.c.l.b16 %v725
    %v755 = vunpack.c.l.b16 %v726
    %v756 = vunpack.c.h.b16 %v726
    %v757 = vunpack.c.l.b16 %v727
    %v758 = vunpack.c.l.b16 %v728
    %v759 = vunpack.c.h.b16 %v728
    %v760 = vunpack.c.l.b16 %v729
    %v761 = vpack.c.b16 %v749, %v746
    %v762 = vpack.c.b16 %v750, %v747
    %v763 = vpack.c.b16 %v751, %v748
    %v764 = vpack.c.b16 %v755, %v752
    %v765 = vpack.c.b16 %v756, %v753
    %v766 = vpack.c.b16 %v757, %v754
    %v767 = vpack.c.b16 %v758, %v758
    %v768 = vpack.c.b16 %v759, %v759
    %v769 = vpack.c.b16 %v760, %v760
    %v777 = vsel %vm361, %v767, 0
    %v780 = vsel %vm361, %v768, 0
    %v783 = vsel %vm361, %v769, 0
    %785 = vmatprep.subr.bf16.mxu0 0
    %786 = vmatpush1.bf16.msra.mxu0 0
    %787 = vmatprep.subr.bf16.mxu0 0
    %788 = vmatpush1.bf16.msra.mxu0 0
    %789 = vmatprep.subr.bf16.mxu0 0
    %790 = vmatpush1.bf16.msra.mxu0 0
    %791 = vmatprep.subr.bf16.mxu0 0
    %792 = vmatpush1.bf16.msra.mxu0 0
    %793 = vmatprep.subr.bf16.mxu0 0
    %794 = vmatpush1.bf16.msra.mxu0 0
    %795 = vmatprep.subr.bf16.mxu0 %v780
    %796 = vmatpush1.bf16.msra.mxu0 %v777
    %797 = vmatprep.subr.bf16.mxu0 %v765
    %798 = vmatpush1.bf16.msra.mxu0 %v764
    %799 = vmatprep.subr.bf16.mxu0 %v762
    %800 = vmatpush1.bf16.msra.mxu0 %v761
    %801 = vmatprep.subr.bf16.mxu0 0
    %802 = vmatpush2.bf16.msra.mxu0 0
    %803 = vmatprep.subr.bf16.mxu0 0
    %804 = vmatpush2.bf16.msra.mxu0 0
    %805 = vmatprep.subr.bf16.mxu0 0
    %806 = vmatpush2.bf16.msra.mxu0 0
    %807 = vmatprep.subr.bf16.mxu0 0
    %808 = vmatpush2.bf16.msra.mxu0 0
    %809 = vmatprep.subr.bf16.mxu0 0
    %810 = vmatpush2.bf16.msra.mxu0 0
    %811 = vmatprep.subr.bf16.mxu0 0
    %812 = vmatpush2.bf16.msra.mxu0 0
    %813 = vmatprep.subr.bf16.mxu0 0
    %814 = vmatpush2.bf16.msra.mxu0 0
    %815 = vmatprep.subr.bf16.mxu0 0
    %816 = vmatpush2.bf16.msra.mxu0 0
    %817 = vmatprep.mubr.bf16.mxu0 0
    %818 = vmatmul.mubr.bf16.gmra.mxu0 %v359
    %v819 = vpop.f32.mrf.mxu0
    %v820 = vadd.f32 %v734, %v819
    %v821 = vpop.f32.mrf.mxu0
    %v822 = vadd.f32 %v734, %v821
    %v823 = vpop.f32.mrf.mxu0
    %v824 = vpop.f32.mrf.mxu0
    %825 = vdwg.mxu0
    %826 = vmatprep.subr.bf16.mxu0 0
    %827 = vmatpush1.bf16.msra.mxu0 0
    %828 = vmatprep.subr.bf16.mxu0 0
    %829 = vmatpush1.bf16.msra.mxu0 0
    %830 = vmatprep.subr.bf16.mxu0 0
    %831 = vmatpush1.bf16.msra.mxu0 0
    %832 = vmatprep.subr.bf16.mxu0 0
    %833 = vmatpush1.bf16.msra.mxu0 0
    %834 = vmatprep.subr.bf16.mxu0 0
    %835 = vmatpush1.bf16.msra.mxu0 0
    %836 = vmatprep.subr.bf16.mxu0 0
    %837 = vmatpush1.bf16.msra.mxu0 %v783
    %838 = vmatprep.subr.bf16.mxu0 0
    %839 = vmatpush1.bf16.msra.mxu0 %v766
    %840 = vmatprep.subr.bf16.mxu0 0
    %841 = vmatpush1.bf16.msra.mxu0 %v763
    %842 = vmatprep.subr.bf16.mxu0 0
    %843 = vmatpush2.bf16.msra.mxu0 0
    %844 = vmatprep.subr.bf16.mxu0 0
    %845 = vmatpush2.bf16.msra.mxu0 0
    %846 = vmatprep.subr.bf16.mxu0 0
    %847 = vmatpush2.bf16.msra.mxu0 0
    %848 = vmatprep.subr.bf16.mxu0 0
    %849 = vmatpush2.bf16.msra.mxu0 0
    %850 = vmatprep.subr.bf16.mxu0 0
    %851 = vmatpush2.bf16.msra.mxu0 0
    %852 = vmatprep.subr.bf16.mxu0 0
    %853 = vmatpush2.bf16.msra.mxu0 0
    %854 = vmatprep.subr.bf16.mxu0 0
    %855 = vmatpush2.bf16.msra.mxu0 0
    %856 = vmatprep.subr.bf16.mxu0 0
    %857 = vmatpush2.bf16.msra.mxu0 0
    %858 = vmatprep.mubr.bf16.mxu0 0
    %859 = vmatmul.mubr.bf16.gmra.mxu0 %v359
    %v860 = vpop.f32.mrf.mxu0
    %v861 = vadd.f32 %v734, %v860
    %v862 = vpop.f32.mrf.mxu0
    %v863 = vpop.f32.mrf.mxu0
    %v864 = vpop.f32.mrf.mxu0
    %865 = vdwg.mxu0
    %v866 = vmax.f32 %v820, 0.0
    %v867 = vmax.f32 %v822, 0.0
    %v868 = vmax.f32 %v861, 0.0
    %s869 = scalar_lea.vmem [#allocation6], 24
    %870 = vst [vmem:[%s869] sm:$0xff] %v866
    %871 = vst [vmem:[%s869 + $0x8] sm:$0xff] %v867
    %872 = vst [vmem:[%s869 + $0x10] sm:$0xff] %v868
    // Predicated region
    $region18: #{tpu_custom_call.1} parent=1 // pred_check
      _
    $region19: #{tpu_custom_call.1} parent=1 // pred_check_branch
      %874 = sbr.rel (0) target = $region21
    $region20: #{tpu_custom_call.1} parent=1 // pred_region
      %s876 = ssub.s32 768, 768
      %877 = vsyncadd [#allocation5], %s876
      %s878 = sshll.u32 [#allocation6], 4
      %s879 = int_to_ptr.vmem [resolvable:$true] %s878
      %884 = dma.vmem_to_hbm [thread:$0]  %s879, 768, %s3, [#allocation5], 384, 384, 24
    $region21: #{tpu_custom_call.1} parent=1 // pred_fallthru
      _
    // Predicated region
    $region22: #{tpu_custom_call.1} parent=1 // pred_check
      _
    $region23: #{tpu_custom_call.1} parent=1 // pred_check_branch
      %886 = sbr.rel (0) target = $region25
    $region24: #{tpu_custom_call.1} parent=1 // pred_region
      %887 = dma.done [#allocation5], 768
    $region25: #{tpu_custom_call.1} parent=1 // pred_fallthru
      _
    %888 = vsyncpa [#allocation4], 1
    %889 = vsyncpa [#allocation5], 1

</llo_original>
